<compile_context>
chip_gen: v7x
topology: tpu7x:2x2x1
jax: 0.10.0
libtpu: 0.0.40
codegen_flags: <defaults>
</compile_context>

<pallas_src>
import functools

import jax
import jax.numpy as jnp
from jax.experimental import pallas as pl
from jax.experimental.pallas import tpu as pltpu

_K_PAD = 128   # padded contraction dim for the first layer (input_shape -> 128)
_P_OUT = 128   # padded lane width of the fused [adv | val] output block


def _round_up(x, m):
    return (x + m - 1) // m * m


def _dueling_dqn_kernel(
    x_ref,                  # (TB, 128) bf16   zero-padded input tile
    w1_ref, b1_ref,         # (128, 128) bf16, (1, 128) f32   body layer 1
    w2_ref, b2_ref,         # (128, 256) bf16, (1, 256) f32   body layer 2
    wh_ref, bh_ref,         # (256, 512) bf16, (1, 512) f32   fused [adv|val] hidden
    wo_ref, bo_ref,         # (512, 128) bf16, (1, 128) f32   block-diag fused output
    q_ref,                  # (TB, 128) f32    padded q output (lanes [0:A] valid)
    *, num_actions,
):
    x = x_ref[...]

    # body: Linear -> ReLU -> Linear -> ReLU  (bf16 MXU operands, f32 accum)
    h1 = jnp.dot(x, w1_ref[...], preferred_element_type=jnp.float32) + b1_ref[...]
    h1 = jnp.maximum(h1, 0.0).astype(jnp.bfloat16)
    feat = jnp.dot(h1, w2_ref[...], preferred_element_type=jnp.float32) + b2_ref[...]
    feat = jnp.maximum(feat, 0.0).astype(jnp.bfloat16)

    # fused head hiddens: lanes [0:256] = advantage hidden, [256:512] = value hidden
    hh = jnp.dot(feat, wh_ref[...], preferred_element_type=jnp.float32) + bh_ref[...]
    hh = jnp.maximum(hh, 0.0).astype(jnp.bfloat16)

    # fused block-diagonal output: lanes [0:A] = advantages, lane A = value
    out = jnp.dot(hh, wo_ref[...], preferred_element_type=jnp.float32) + bo_ref[...]

    # dueling combine with lane masks (mean over the TRUE num_actions lanes only)
    lane = jax.lax.broadcasted_iota(jnp.int32, out.shape, 1)
    adv_mask = lane < num_actions
    adv_sum = jnp.sum(jnp.where(adv_mask, out, 0.0), axis=1, keepdims=True)
    adv_mean = adv_sum * (1.0 / num_actions)
    val = jnp.sum(jnp.where(lane == num_actions, out, 0.0), axis=1, keepdims=True)
    q = val + (out - adv_mean)
    q_ref[...] = jnp.where(adv_mask, q, 0.0)


def prepare_params(params):
    """Host-side fuse / pad / cast of the PyTorch-shaped parameters."""
    input_shape = params["w1"].shape[0]
    num_actions = params["wa2"].shape[1]
    assert num_actions + 1 <= _P_OUT, "num_actions must fit in one 128-lane block"

    # pad first-layer K to 128 (zero rows contribute nothing)
    w1 = jnp.zeros((_K_PAD, 128), jnp.float32).at[:input_shape, :].set(params["w1"])

    # fuse advantage/value hidden layers: (256, 512) and (1, 512)
    w_heads = jnp.concatenate([params["wa1"], params["wv1"]], axis=1)
    b_heads = jnp.concatenate([params["ba1"], params["bv1"]], axis=1)

    # block-diagonal fused output: rows 0:256 -> adv lanes [0:A], rows 256:512 -> val lane A
    w_out = jnp.zeros((512, _P_OUT), jnp.float32)
    w_out = w_out.at[:256, :num_actions].set(params["wa2"])
    w_out = w_out.at[256:, num_actions:num_actions + 1].set(params["wv2"])
    b_out = jnp.zeros((1, _P_OUT), jnp.float32)
    b_out = b_out.at[:, :num_actions].set(params["ba2"])
    b_out = b_out.at[:, num_actions:num_actions + 1].set(params["bv2"])

    fused = dict(
        w1=w1.astype(jnp.bfloat16), b1=params["b1"],
        w2=params["w2"].astype(jnp.bfloat16), b2=params["b2"],
        w_heads=w_heads.astype(jnp.bfloat16), b_heads=b_heads,
        w_out=w_out.astype(jnp.bfloat16), b_out=b_out,
    )
    return fused, num_actions, input_shape


@functools.partial(jax.jit, static_argnames=("num_actions", "input_shape"))
def dueling_dqn_forward(x, fused, *, num_actions, input_shape):
    """x: (batch, input_shape) f32. Returns q: (batch, num_actions) f32."""
    batch = x.shape[0]

    # batch tile: multiple of 8 sublanes, capped at 256 (activations stay small;
    # resident weights ~0.5 MiB bf16 -> comfortably inside v7x's scoped VMEM)
    tb = 256 if batch >= 256 else _round_up(batch, 8)
    b_pad = _round_up(batch, tb)

    x_pad = jnp.zeros((b_pad, _K_PAD), jnp.bfloat16)
    x_pad = x_pad.at[:batch, :input_shape].set(x.astype(jnp.bfloat16))

    const = lambda i: (0, 0)
    kernel = functools.partial(_dueling_dqn_kernel, num_actions=num_actions)

    q_pad = pl.pallas_call(
        kernel,
        out_shape=jax.ShapeDtypeStruct((b_pad, _P_OUT), jnp.float32),
        grid=(b_pad // tb,),
        in_specs=[
            pl.BlockSpec((tb, _K_PAD), lambda i: (i, 0)),   # x: pipelined per step
            pl.BlockSpec((_K_PAD, 128), const),             # weights/biases: resident
            pl.BlockSpec((1, 128), const),
            pl.BlockSpec((128, 256), const),
            pl.BlockSpec((1, 256), const),
            pl.BlockSpec((256, 512), const),
            pl.BlockSpec((1, 512), const),
            pl.BlockSpec((512, _P_OUT), const),
            pl.BlockSpec((1, _P_OUT), const),
        ],
        out_specs=pl.BlockSpec((tb, _P_OUT), lambda i: (i, 0)),
        compiler_params=pltpu.CompilerParams(
            dimension_semantics=("parallel",),
        ),
    )(
        x_pad,
        fused["w1"], fused["b1"],
        fused["w2"], fused["b2"],
        fused["w_heads"], fused["b_heads"],
        fused["w_out"], fused["b_out"],
    )
    return q_pad[:batch, :num_actions]


def init_params(key, input_shape, num_actions):
    """Deterministic synthetic parameter init (shapes mirror the nn.Module)."""
    dims = [
        ("w1", (input_shape, 128)), ("b1", (1, 128)),
        ("w2", (128, 256)), ("b2", (1, 256)),
        ("wa1", (256, 256)), ("ba1", (1, 256)),
        ("wa2", (256, num_actions)), ("ba2", (1, num_actions)),
        ("wv1", (256, 256)), ("bv1", (1, 256)),
        ("wv2", (256, 1)), ("bv2", (1, 1)),
    ]
    params = {}
    keys = jax.random.split(key, len(dims))
    for (name, shape), k in zip(dims, keys):
        fan_in = shape[0] if name.startswith("w") else 1
        scale = 1.0 / jnp.sqrt(jnp.float32(max(fan_in, 1)))
        params[name] = scale * jax.random.normal(k, shape, jnp.float32)
    return params


def reference_forward(x, p):
    """Plain-JAX reference matching the kernel's precision (bf16 matmuls, f32 acc)."""
    def lin(h, w, b):
        return jnp.dot(h.astype(jnp.bfloat16), w.astype(jnp.bfloat16),
                       preferred_element_type=jnp.float32) + b
    h1 = jnp.maximum(lin(x, p["w1"], p["b1"]), 0.0)
    feat = jnp.maximum(lin(h1, p["w2"], p["b2"]), 0.0)
    ah = jnp.maximum(lin(feat, p["wa1"], p["ba1"]), 0.0)
    adv = lin(ah, p["wa2"], p["ba2"])
    vh = jnp.maximum(lin(feat, p["wv1"], p["bv1"]), 0.0)
    val = lin(vh, p["wv2"], p["bv2"])
    return val + (adv - jnp.mean(adv, axis=1, keepdims=True))


if __name__ == "__main__":
    batch = 2
    input_shape = 16
    num_actions = 4

    key = jax.random.PRNGKey(0)
    kx, kp = jax.random.split(key)
    x = jax.random.normal(kx, (batch, input_shape), jnp.float32)
    params = init_params(kp, input_shape, num_actions)

    fused, na, ish = prepare_params(params)
    q = dueling_dqn_forward(x, fused, num_actions=na, input_shape=ish)
    q = jax.block_until_ready(q)

    q_ref = reference_forward(x, params)
    assert q.shape == (batch, num_actions)
    assert jnp.allclose(q, q_ref, atol=1e-2, rtol=1e-2), "mismatch vs reference"

    print("KERNEL_OK")
</pallas_src>

<mosaic_0001>
module attributes {stable_mosaic.version = 11 : i64} {
  func.func @_dueling_dqn_kernel(%arg0: i32, %arg1: memref<8x128xbf16, #tpu.memory_space<vmem>>, %arg2: memref<128x128xbf16, #tpu.memory_space<vmem>>, %arg3: memref<1x128xf32, #tpu.memory_space<vmem>>, %arg4: memref<128x256xbf16, #tpu.memory_space<vmem>>, %arg5: memref<1x256xf32, #tpu.memory_space<vmem>>, %arg6: memref<256x512xbf16, #tpu.memory_space<vmem>>, %arg7: memref<1x512xf32, #tpu.memory_space<vmem>>, %arg8: memref<512x128xbf16, #tpu.memory_space<vmem>>, %arg9: memref<1x128xf32, #tpu.memory_space<vmem>>, %arg10: memref<8x128xf32, #tpu.memory_space<vmem>>) attributes {dimension_semantics = [#tpu.dimension_semantics<parallel>], iteration_bounds = array<i64: 1>, scalar_prefetch = 0 : i64, scratch_operands = 0 : i64, tpu.core_type = #tpu.core_type<tc>, window_params = [{transform_indices = @transform_0, window_bounds = array<i64: 8, 128>}, {pipeline_mode = #tpu.pipeline_mode<synchronous>, transform_indices = @transform_1, window_bounds = array<i64: 128, 128>}, {pipeline_mode = #tpu.pipeline_mode<synchronous>, transform_indices = @transform_2, window_bounds = array<i64: 1, 128>}, {pipeline_mode = #tpu.pipeline_mode<synchronous>, transform_indices = @transform_3, window_bounds = array<i64: 128, 256>}, {pipeline_mode = #tpu.pipeline_mode<synchronous>, transform_indices = @transform_4, window_bounds = array<i64: 1, 256>}, {pipeline_mode = #tpu.pipeline_mode<synchronous>, transform_indices = @transform_5, window_bounds = array<i64: 256, 512>}, {pipeline_mode = #tpu.pipeline_mode<synchronous>, transform_indices = @transform_6, window_bounds = array<i64: 1, 512>}, {pipeline_mode = #tpu.pipeline_mode<synchronous>, transform_indices = @transform_7, window_bounds = array<i64: 512, 128>}, {pipeline_mode = #tpu.pipeline_mode<synchronous>, transform_indices = @transform_8, window_bounds = array<i64: 1, 128>}, {transform_indices = @transform_9, window_bounds = array<i64: 8, 128>}]} {
    %c0 = arith.constant 0 : index
    %c0_0 = arith.constant 0 : index
    %0 = vector.load %arg1[%c0, %c0_0] : memref<8x128xbf16, #tpu.memory_space<vmem>>, vector<8x128xbf16>
    %c0_1 = arith.constant 0 : index
    %c0_2 = arith.constant 0 : index
    %1 = vector.load %arg2[%c0_1, %c0_2] : memref<128x128xbf16, #tpu.memory_space<vmem>>, vector<128x128xbf16>
    %cst = arith.constant dense<0.000000e+00> : vector<8x128xf32>
    %2 = tpu.matmul %0, %1, %cst {dimension_numbers = #tpu.dot_dimension_numbers<[1], [0], [0], [1], [0, 0, 1, 1], [], []>} : vector<8x128xbf16>, vector<128x128xbf16>, vector<8x128xf32> -> vector<8x128xf32>
    %c0_3 = arith.constant 0 : index
    %c0_4 = arith.constant 0 : index
    %3 = vector.load %arg3[%c0_3, %c0_4] : memref<1x128xf32, #tpu.memory_space<vmem>>, vector<1x128xf32>
    %4 = vector.broadcast %3 : vector<1x128xf32> to vector<8x128xf32>
    %5 = arith.addf %2, %4 : vector<8x128xf32>
    %cst_5 = arith.constant 0.000000e+00 : f32
    %6 = vector.broadcast %cst_5 : f32 to vector<8x128xf32>
    %7 = arith.maximumf %5, %6 : vector<8x128xf32>
    %8 = arith.truncf %7 : vector<8x128xf32> to vector<8x128xbf16>
    %c0_6 = arith.constant 0 : index
    %c0_7 = arith.constant 0 : index
    %9 = vector.load %arg4[%c0_6, %c0_7] : memref<128x256xbf16, #tpu.memory_space<vmem>>, vector<128x256xbf16>
    %cst_8 = arith.constant dense<0.000000e+00> : vector<8x256xf32>
    %10 = tpu.matmul %8, %9, %cst_8 {dimension_numbers = #tpu.dot_dimension_numbers<[1], [0], [0], [1], [0, 0, 1, 1], [], []>} : vector<8x128xbf16>, vector<128x256xbf16>, vector<8x256xf32> -> vector<8x256xf32>
    %c0_9 = arith.constant 0 : index
    %c0_10 = arith.constant 0 : index
    %11 = vector.load %arg5[%c0_9, %c0_10] : memref<1x256xf32, #tpu.memory_space<vmem>>, vector<1x256xf32>
    %12 = vector.broadcast %11 : vector<1x256xf32> to vector<8x256xf32>
    %13 = arith.addf %10, %12 : vector<8x256xf32>
    %cst_11 = arith.constant 0.000000e+00 : f32
    %14 = vector.broadcast %cst_11 : f32 to vector<8x256xf32>
    %15 = arith.maximumf %13, %14 : vector<8x256xf32>
    %16 = arith.truncf %15 : vector<8x256xf32> to vector<8x256xbf16>
    %c0_12 = arith.constant 0 : index
    %c0_13 = arith.constant 0 : index
    %17 = vector.load %arg6[%c0_12, %c0_13] : memref<256x512xbf16, #tpu.memory_space<vmem>>, vector<256x512xbf16>
    %cst_14 = arith.constant dense<0.000000e+00> : vector<8x512xf32>
    %18 = tpu.matmul %16, %17, %cst_14 {dimension_numbers = #tpu.dot_dimension_numbers<[1], [0], [0], [1], [0, 0, 1, 1], [], []>} : vector<8x256xbf16>, vector<256x512xbf16>, vector<8x512xf32> -> vector<8x512xf32>
    %c0_15 = arith.constant 0 : index
    %c0_16 = arith.constant 0 : index
    %19 = vector.load %arg7[%c0_15, %c0_16] : memref<1x512xf32, #tpu.memory_space<vmem>>, vector<1x512xf32>
    %20 = vector.broadcast %19 : vector<1x512xf32> to vector<8x512xf32>
    %21 = arith.addf %18, %20 : vector<8x512xf32>
    %cst_17 = arith.constant 0.000000e+00 : f32
    %22 = vector.broadcast %cst_17 : f32 to vector<8x512xf32>
    %23 = arith.maximumf %21, %22 : vector<8x512xf32>
    %24 = arith.truncf %23 : vector<8x512xf32> to vector<8x512xbf16>
    %c0_18 = arith.constant 0 : index
    %c0_19 = arith.constant 0 : index
    %25 = vector.load %arg8[%c0_18, %c0_19] : memref<512x128xbf16, #tpu.memory_space<vmem>>, vector<512x128xbf16>
    %cst_20 = arith.constant dense<0.000000e+00> : vector<8x128xf32>
    %26 = tpu.matmul %24, %25, %cst_20 {dimension_numbers = #tpu.dot_dimension_numbers<[1], [0], [0], [1], [0, 0, 1, 1], [], []>} : vector<8x512xbf16>, vector<512x128xbf16>, vector<8x128xf32> -> vector<8x128xf32>
    %c0_21 = arith.constant 0 : index
    %c0_22 = arith.constant 0 : index
    %27 = vector.load %arg9[%c0_21, %c0_22] : memref<1x128xf32, #tpu.memory_space<vmem>>, vector<1x128xf32>
    %28 = vector.broadcast %27 : vector<1x128xf32> to vector<8x128xf32>
    %29 = arith.addf %26, %28 : vector<8x128xf32>
    %30 = tpu.iota {dimensions = array<i32: 1>} : vector<8x128xi32>
    %c4_i32 = arith.constant 4 : i32
    %31 = vector.broadcast %c4_i32 : i32 to vector<8x128xi32>
    %32 = arith.cmpi slt, %30, %31 : vector<8x128xi32>
    %cst_23 = arith.constant 0.000000e+00 : f32
    %33 = vector.broadcast %cst_23 : f32 to vector<8x128xf32>
    %34 = arith.select %32, %29, %33 : vector<8x128xi1>, vector<8x128xf32>
    %cst_24 = arith.constant dense<0.000000e+00> : vector<8xf32>
    %35 = vector.multi_reduction <add>, %34, %cst_24 [1] : vector<8x128xf32> to vector<8xf32>
    %36 = vector.shape_cast %35 : vector<8xf32> to vector<8x1xf32>
    %cst_25 = arith.constant 2.500000e-01 : f32
    %37 = vector.broadcast %cst_25 : f32 to vector<8x1xf32>
    %38 = arith.mulf %36, %37 : vector<8x1xf32>
    %c4_i32_26 = arith.constant 4 : i32
    %39 = vector.broadcast %c4_i32_26 : i32 to vector<8x128xi32>
    %40 = arith.cmpi eq, %30, %39 : vector<8x128xi32>
    %cst_27 = arith.constant 0.000000e+00 : f32
    %41 = vector.broadcast %cst_27 : f32 to vector<8x128xf32>
    %42 = arith.select %40, %29, %41 : vector<8x128xi1>, vector<8x128xf32>
    %cst_28 = arith.constant dense<0.000000e+00> : vector<8xf32>
    %43 = vector.multi_reduction <add>, %42, %cst_28 [1] : vector<8x128xf32> to vector<8xf32>
    %44 = vector.shape_cast %43 : vector<8xf32> to vector<8x1xf32>
    %45 = vector.broadcast %38 : vector<8x1xf32> to vector<8x128xf32>
    %46 = arith.subf %29, %45 : vector<8x128xf32>
    %47 = vector.broadcast %44 : vector<8x1xf32> to vector<8x128xf32>
    %48 = arith.addf %47, %46 : vector<8x128xf32>
    %cst_29 = arith.constant 0.000000e+00 : f32
    %49 = vector.broadcast %cst_29 : f32 to vector<8x128xf32>
    %50 = arith.select %32, %48, %49 : vector<8x128xi1>, vector<8x128xf32>
    %c0_30 = arith.constant 0 : index
    %c0_31 = arith.constant 0 : index
    %51 = vector.load %arg10[%c0_30, %c0_31] : memref<8x128xf32, #tpu.memory_space<vmem>>, vector<8x128xf32>
    tpu.vector_store %arg10[%c0_30, %c0_31], %50 {strides = array<i32>} : memref<8x128xf32, #tpu.memory_space<vmem>>, vector<8x128xf32>,
    return
  }
  func.func @transform_0(%arg0: i32) -> (i32, i32) {
    %c0_i32 = arith.constant 0 : i32
    %c0_i32_0 = arith.constant 0 : i32
    return %arg0, %c0_i32 : i32, i32
  }
  func.func @transform_1(%arg0: i32) -> (i32, i32) {
    %c0_i32 = arith.constant 0 : i32
    %c0_i32_0 = arith.constant 0 : i32
    %c0_i32_1 = arith.constant 0 : i32
    return %c0_i32, %c0_i32_0 : i32, i32
  }
  func.func @transform_2(%arg0: i32) -> (i32, i32) {
    %c0_i32 = arith.constant 0 : i32
    %c0_i32_0 = arith.constant 0 : i32
    %c0_i32_1 = arith.constant 0 : i32
    return %c0_i32, %c0_i32_0 : i32, i32
  }
  func.func @transform_3(%arg0: i32) -> (i32, i32) {
    %c0_i32 = arith.constant 0 : i32
    %c0_i32_0 = arith.constant 0 : i32
    %c0_i32_1 = arith.constant 0 : i32
    return %c0_i32, %c0_i32_0 : i32, i32
  }
  func.func @transform_4(%arg0: i32) -> (i32, i32) {
    %c0_i32 = arith.constant 0 : i32
    %c0_i32_0 = arith.constant 0 : i32
    %c0_i32_1 = arith.constant 0 : i32
    return %c0_i32, %c0_i32_0 : i32, i32
  }
  func.func @transform_5(%arg0: i32) -> (i32, i32) {
    %c0_i32 = arith.constant 0 : i32
    %c0_i32_0 = arith.constant 0 : i32
    %c0_i32_1 = arith.constant 0 : i32
    return %c0_i32, %c0_i32_0 : i32, i32
  }
  func.func @transform_6(%arg0: i32) -> (i32, i32) {
    %c0_i32 = arith.constant 0 : i32
    %c0_i32_0 = arith.constant 0 : i32
    %c0_i32_1 = arith.constant 0 : i32
    return %c0_i32, %c0_i32_0 : i32, i32
  }
  func.func @transform_7(%arg0: i32) -> (i32, i32) {
    %c0_i32 = arith.constant 0 : i32
    %c0_i32_0 = arith.constant 0 : i32
    %c0_i32_1 = arith.constant 0 : i32
    return %c0_i32, %c0_i32_0 : i32, i32
  }
  func.func @transform_8(%arg0: i32) -> (i32, i32) {
    %c0_i32 = arith.constant 0 : i32
    %c0_i32_0 = arith.constant 0 : i32
    %c0_i32_1 = arith.constant 0 : i32
    return %c0_i32, %c0_i32_0 : i32, i32
  }
  func.func @transform_9(%arg0: i32) -> (i32, i32) {
    %c0_i32 = arith.constant 0 : i32
    %c0_i32_0 = arith.constant 0 : i32
    return %arg0, %c0_i32 : i32, i32
  }
}

</mosaic_0001>

<llo_original>
// kernel: dueling_dqn_forward.1
$region0: #{dueling_dqn_forward.1}
  #allocation0 [shape = 'u32[]', space=smem, size = 0x4, offset = 0x4, fixed_abs, tag = 'smem constant byte address 0x4 - core index']
  #allocation1 [shape = 'u32[144,128]{1,0:T(1,128)}', space=vmem, size = 0x12000, scoped, tag = 'internal scratch']
  %s0 = inlined_call_operand.vmem [shape: bf16[8,128], index: 0, kind: input, shape index: {}]
  %s1 = inlined_call_operand.hbm [shape: bf16[128,128], index: 1, kind: input, shape index: {}]
  %s2 = inlined_call_operand.vmem [shape: f32[1,128], index: 2, kind: input, shape index: {}]
  %s3 = inlined_call_operand.hbm [shape: bf16[128,256], index: 3, kind: input, shape index: {}]
  %s4 = inlined_call_operand.vmem [shape: f32[1,256], index: 4, kind: input, shape index: {}]
  %s5 = inlined_call_operand.hbm [shape: bf16[256,512], index: 5, kind: input, shape index: {}]
  %s6 = inlined_call_operand.vmem [shape: f32[1,512], index: 6, kind: input, shape index: {}]
  %s7 = inlined_call_operand.hbm [shape: bf16[512,128], index: 7, kind: input, shape index: {}]
  %s8 = inlined_call_operand.vmem [shape: f32[1,128], index: 8, kind: input, shape index: {}]
  %s9 = inlined_call_operand.vmem [shape: f32[8,128], index: 9, kind: output, shape index: {}]
  %s10 = sld [smem:[#allocation0]]
  $region62: #{dueling_dqn_forward.1} parent=0
    _
  %s12 = ssub.s32 1, %s10
  %s13 = scalar_select 0, %s12, %s10
  $region1: #{dueling_dqn_forward.1} parent=0
    #allocation2 [shape = 'u8[32768]{0}', space=vmem, size = 0x8000, scoped, tag = 'input window, operand 1, single buffered']
    #allocation3 [shape = 's32[1]{0}', space=sflag, size = 0x4, scoped, tag = 'scoped memory for dueling_dqn_forward.1']
    #allocation4 [shape = 'u8[65536]{0}', space=vmem, size = 0x10000, scoped, tag = 'input window, operand 3, single buffered']
    #allocation5 [shape = 's32[1]{0}', space=sflag, size = 0x4, scoped, tag = 'scoped memory for dueling_dqn_forward.1']
    #allocation6 [shape = 'u8[262144]{0}', space=vmem, size = 0x40000, scoped, tag = 'input window, operand 5, single buffered']
    #allocation7 [shape = 'u8[131072]{0}', space=vmem, size = 0x20000, scoped, tag = 'input window, operand 7, single buffered']
    #allocation8 [shape = 's32[1]{0}', space=sflag, size = 0x4, scoped, tag = 'scoped memory for dueling_dqn_forward.1']
    %14 = vsyncpa [#allocation3], 0
    %15 = vsyncpa [#allocation5], 0
    %16 = vsyncpa [#allocation8], 0
    // Predicated region
    $region2: #{dueling_dqn_forward.1} parent=1 // pred_check
      _
    $region3: #{dueling_dqn_forward.1} parent=1 // pred_check_branch
      %18 = sbr.rel (0) target = $region5
    $region4: #{dueling_dqn_forward.1} parent=1 // pred_region
      _
    $region5: #{dueling_dqn_forward.1} parent=1 // pred_fallthru
      _
    // Predicated region
    $region6: #{dueling_dqn_forward.1} parent=1 // pred_check
      _
    $region7: #{dueling_dqn_forward.1} parent=1 // pred_check_branch
      %20 = sbr.rel (0) target = $region9
    $region8: #{dueling_dqn_forward.1} parent=1 // pred_region
      %s22 = ssub.s32 1024, 1024
      %23 = vsyncadd [#allocation3], %s22
      %s24 = sshll.u32 [#allocation2], 4
      %s25 = int_to_ptr.vmem [resolvable:$true] %s24
      %30 = dma.hbm_to_vmem [thread:$0]  %s1, 1024, %s25, [#allocation3], 64, 64, 4
    $region9: #{dueling_dqn_forward.1} parent=1 // pred_fallthru
      _
    // Predicated region
    $region10: #{dueling_dqn_forward.1} parent=1 // pred_check
      _
    $region11: #{dueling_dqn_forward.1} parent=1 // pred_check_branch
      %32 = sbr.rel (0) target = $region13
    $region12: #{dueling_dqn_forward.1} parent=1 // pred_region
      _
    $region13: #{dueling_dqn_forward.1} parent=1 // pred_fallthru
      _
    // Predicated region
    $region14: #{dueling_dqn_forward.1} parent=1 // pred_check
      _
    $region15: #{dueling_dqn_forward.1} parent=1 // pred_check_branch
      %34 = sbr.rel (0) target = $region17
    $region16: #{dueling_dqn_forward.1} parent=1 // pred_region
      %s36 = ssub.s32 2048, 2048
      %37 = vsyncadd [#allocation5], %s36
      %s38 = sshll.u32 [#allocation4], 4
      %s39 = int_to_ptr.vmem [resolvable:$true] %s38
      %44 = dma.hbm_to_vmem [thread:$0]  %s3, 2048, %s39, [#allocation5], 128, 128, 8
    $region17: #{dueling_dqn_forward.1} parent=1 // pred_fallthru
      _
    // Predicated region
    $region18: #{dueling_dqn_forward.1} parent=1 // pred_check
      _
    $region19: #{dueling_dqn_forward.1} parent=1 // pred_check_branch
      %46 = sbr.rel (0) target = $region21
    $region20: #{dueling_dqn_forward.1} parent=1 // pred_region
      _
    $region21: #{dueling_dqn_forward.1} parent=1 // pred_fallthru
      _
    // Predicated region
    $region22: #{dueling_dqn_forward.1} parent=1 // pred_check
      _
    $region23: #{dueling_dqn_forward.1} parent=1 // pred_check_branch
      %48 = sbr.rel (0) target = $region25
    $region24: #{dueling_dqn_forward.1} parent=1 // pred_region
      %s50 = ssub.s32 8192, 8192
      %51 = vsyncadd [#allocation5], %s50
      %s52 = sshll.u32 [#allocation6], 4
      %s53 = int_to_ptr.vmem [resolvable:$true] %s52
      %58 = dma.hbm_to_vmem [thread:$0]  %s5, 8192, %s53, [#allocation5], 256, 256, 16
    $region25: #{dueling_dqn_forward.1} parent=1 // pred_fallthru
      _
    // Predicated region
    $region26: #{dueling_dqn_forward.1} parent=1 // pred_check
      _
    $region27: #{dueling_dqn_forward.1} parent=1 // pred_check_branch
      %60 = sbr.rel (0) target = $region29
    $region28: #{dueling_dqn_forward.1} parent=1 // pred_region
      _
    $region29: #{dueling_dqn_forward.1} parent=1 // pred_fallthru
      _
    // Predicated region
    $region30: #{dueling_dqn_forward.1} parent=1 // pred_check
      _
    $region31: #{dueling_dqn_forward.1} parent=1 // pred_check_branch
      %62 = sbr.rel (0) target = $region33
    $region32: #{dueling_dqn_forward.1} parent=1 // pred_region
      %s64 = ssub.s32 4096, 4096
      %65 = vsyncadd [#allocation8], %s64
      %s66 = sshll.u32 [#allocation7], 4
      %s67 = int_to_ptr.vmem [resolvable:$true] %s66
      %72 = dma.hbm_to_vmem [thread:$0]  %s7, 4096, %s67, [#allocation8], 64, 64, 4
    $region33: #{dueling_dqn_forward.1} parent=1 // pred_fallthru
      _
    // Predicated region
    $region34: #{dueling_dqn_forward.1} parent=1 // pred_check
      _
    $region35: #{dueling_dqn_forward.1} parent=1 // pred_check_branch
      %74 = sbr.rel (0) target = $region37
    $region36: #{dueling_dqn_forward.1} parent=1 // pred_region
      _
    $region37: #{dueling_dqn_forward.1} parent=1 // pred_fallthru
      _
    // Predicated region
    $region38: #{dueling_dqn_forward.1} parent=1 // pred_check
      _
    $region39: #{dueling_dqn_forward.1} parent=1 // pred_check_branch
      %76 = sbr.rel (0) target = $region41
    $region40: #{dueling_dqn_forward.1} parent=1 // pred_region
      %77 = dma.done [#allocation3], 1024
    $region41: #{dueling_dqn_forward.1} parent=1 // pred_fallthru
      _
    // Predicated region
    $region42: #{dueling_dqn_forward.1} parent=1 // pred_check
      _
    $region43: #{dueling_dqn_forward.1} parent=1 // pred_check_branch
      %79 = sbr.rel (0) target = $region45
    $region44: #{dueling_dqn_forward.1} parent=1 // pred_region
      %80 = dma.done [#allocation5], 2048
    $region45: #{dueling_dqn_forward.1} parent=1 // pred_fallthru
      _
    // Predicated region
    $region46: #{dueling_dqn_forward.1} parent=1 // pred_check
      _
    $region47: #{dueling_dqn_forward.1} parent=1 // pred_check_branch
      %82 = sbr.rel (0) target = $region49
    $region48: #{dueling_dqn_forward.1} parent=1 // pred_region
      %83 = dma.done [#allocation5], 8192
    $region49: #{dueling_dqn_forward.1} parent=1 // pred_fallthru
      _
    // Predicated region
    $region50: #{dueling_dqn_forward.1} parent=1 // pred_check
      _
    $region51: #{dueling_dqn_forward.1} parent=1 // pred_check_branch
      %85 = sbr.rel (0) target = $region53
    $region52: #{dueling_dqn_forward.1} parent=1 // pred_region
      %86 = dma.done [#allocation8], 4096
    $region53: #{dueling_dqn_forward.1} parent=1 // pred_fallthru
      _
    %v88 = vld [vmem:[%s0] sm:$0xf]
    %v89 = vld [vmem:[#allocation2] sm:$0xf]
    %v90 = vld [vmem:[#allocation2 + $0x4] sm:$0xf]
    %v91 = vld [vmem:[#allocation2 + $0x8] sm:$0xf]
    %v92 = vld [vmem:[#allocation2 + $0xc] sm:$0xf]
    %v93 = vld [vmem:[#allocation2 + $0x10] sm:$0xf]
    %v94 = vld [vmem:[#allocation2 + $0x14] sm:$0xf]
    %v95 = vld [vmem:[#allocation2 + $0x18] sm:$0xf]
    %v96 = vld [vmem:[#allocation2 + $0x1c] sm:$0xf]
    %v97 = vld [vmem:[#allocation2 + $0x20] sm:$0xf]
    %v98 = vld [vmem:[#allocation2 + $0x24] sm:$0xf]
    %v99 = vld [vmem:[#allocation2 + $0x28] sm:$0xf]
    %v100 = vld [vmem:[#allocation2 + $0x2c] sm:$0xf]
    %v101 = vld [vmem:[#allocation2 + $0x30] sm:$0xf]
    %v102 = vld [vmem:[#allocation2 + $0x34] sm:$0xf]
    %v103 = vld [vmem:[#allocation2 + $0x38] sm:$0xf]
    %v104 = vld [vmem:[#allocation2 + $0x3c] sm:$0xf]
    %v105 = vld [vmem:[%s2] sm:$0x1]
    %v107 = vlaneseq
    %v108 = vshrl.u32 %v107, 7
    %v109 = vsub.s32 0, %v108
    %v110 = vrot.slane %v105, %v109
    %v128 = vunpack.c.l.b16 %v89
    %v129 = vunpack.c.l.b16 %v90
    %v130 = vunpack.c.l.b16 %v91
    %v131 = vunpack.c.l.b16 %v92
    %v132 = vunpack.c.l.b16 %v93
    %v133 = vunpack.c.l.b16 %v94
    %v134 = vunpack.c.l.b16 %v95
    %v135 = vunpack.c.l.b16 %v96
    %v136 = vunpack.c.l.b16 %v97
    %v137 = vunpack.c.l.b16 %v98
    %v138 = vunpack.c.l.b16 %v99
    %v139 = vunpack.c.l.b16 %v100
    %v140 = vunpack.c.l.b16 %v101
    %v141 = vunpack.c.l.b16 %v102
    %v142 = vunpack.c.l.b16 %v103
    %v143 = vunpack.c.l.b16 %v104
    %v144 = vpack.c.b16 %v129, %v128
    %v145 = vpack.c.b16 %v131, %v130
    %v146 = vpack.c.b16 %v133, %v132
    %v147 = vpack.c.b16 %v135, %v134
    %v148 = vpack.c.b16 %v137, %v136
    %v149 = vpack.c.b16 %v139, %v138
    %v150 = vpack.c.b16 %v141, %v140
    %v151 = vpack.c.b16 %v143, %v142
    %160 = vmatprep.subr.bf16.mxu0 0
    %161 = vmatpush1.bf16.msra.mxu0 %v144
    %162 = vmatprep.subr.bf16.mxu0 0
    %163 = vmatpush1.bf16.msra.mxu0 %v145
    %164 = vmatprep.subr.bf16.mxu0 0
    %165 = vmatpush1.bf16.msra.mxu0 %v146
    %166 = vmatprep.subr.bf16.mxu0 0
    %167 = vmatpush1.bf16.msra.mxu0 %v147
    %168 = vmatprep.subr.bf16.mxu0 0
    %169 = vmatpush1.bf16.msra.mxu0 %v148
    %170 = vmatprep.subr.bf16.mxu0 0
    %171 = vmatpush1.bf16.msra.mxu0 %v149
    %172 = vmatprep.subr.bf16.mxu0 0
    %173 = vmatpush1.bf16.msra.mxu0 %v150
    %174 = vmatprep.subr.bf16.mxu0 0
    %175 = vmatpush1.bf16.msra.mxu0 %v151
    %176 = vmatprep.subr.bf16.mxu0 0
    %177 = vmatpush1.bf16.msra.mxu0 0
    %178 = vmatprep.subr.bf16.mxu0 0
    %179 = vmatpush1.bf16.msra.mxu0 0
    %180 = vmatprep.subr.bf16.mxu0 0
    %181 = vmatpush1.bf16.msra.mxu0 0
    %182 = vmatprep.subr.bf16.mxu0 0
    %183 = vmatpush1.bf16.msra.mxu0 0
    %184 = vmatprep.subr.bf16.mxu0 0
    %185 = vmatpush1.bf16.msra.mxu0 0
    %186 = vmatprep.subr.bf16.mxu0 0
    %187 = vmatpush1.bf16.msra.mxu0 0
    %188 = vmatprep.subr.bf16.mxu0 0
    %189 = vmatpush1.bf16.msra.mxu0 0
    %190 = vmatprep.subr.bf16.mxu0 0
    %191 = vmatpush1.bf16.msra.mxu0 0
    %192 = vmatprep.mubr.bf16.mxu0 0
    %193 = vmatmul.mubr.bf16.gmra.mrb[0].mxu0 %v88
    %v194 = vpop.f32.mrb[0].mxu0
    %v195 = vadd.f32 %v110, %v194
    %v196 = vpop.f32.mrb[0].mxu0
    %v197 = vpop.f32.mrb[0].mxu0
    %v198 = vpop.f32.mrb[0].mxu0
    %199 = vdwg.mxu0
    %v200 = vmax.f32 %v195, 0.0
    %v201 = vpack.c.bf16 %v200, %v200
    %v202 = vld [vmem:[#allocation4] sm:$0xff]
    %v203 = vld [vmem:[#allocation4 + $0x8] sm:$0xff]
    %v204 = vld [vmem:[#allocation4 + $0x10] sm:$0xff]
    %v205 = vld [vmem:[#allocation4 + $0x18] sm:$0xff]
    %v206 = vld [vmem:[#allocation4 + $0x20] sm:$0xff]
    %v207 = vld [vmem:[#allocation4 + $0x28] sm:$0xff]
    %v208 = vld [vmem:[#allocation4 + $0x30] sm:$0xff]
    %v209 = vld [vmem:[#allocation4 + $0x38] sm:$0xff]
    %v210 = vld [vmem:[#allocation4 + $0x40] sm:$0xff]
    %v211 = vld [vmem:[#allocation4 + $0x48] sm:$0xff]
    %v212 = vld [vmem:[#allocation4 + $0x50] sm:$0xff]
    %v213 = vld [vmem:[#allocation4 + $0x58] sm:$0xff]
    %v214 = vld [vmem:[#allocation4 + $0x60] sm:$0xff]
    %v215 = vld [vmem:[#allocation4 + $0x68] sm:$0xff]
    %v216 = vld [vmem:[#allocation4 + $0x70] sm:$0xff]
    %v217 = vld [vmem:[#allocation4 + $0x78] sm:$0xff]
    %v218 = vld [vmem:[%s4] sm:$0x3]
    %v220 = vlaneseq
    %v221 = vshrl.u32 %v220, 7
    %v222 = vsub.s32 0, %v221
    %v223 = vrot.slane %v218, %v222
    %v224 = vlaneseq
    %v225 = vshrl.u32 %v224, 7
    %v226 = vsub.s32 1, %v225
    %v227 = vrot.slane %v218, %v226
    %v246 = vunpack.c.l.b16 %v202
    %v247 = vunpack.c.h.b16 %v202
    %v248 = vunpack.c.l.b16 %v203
    %v249 = vunpack.c.h.b16 %v203
    %v250 = vunpack.c.l.b16 %v204
    %v251 = vunpack.c.h.b16 %v204
    %v252 = vunpack.c.l.b16 %v205
    %v253 = vunpack.c.h.b16 %v205
    %v254 = vunpack.c.l.b16 %v206
    %v255 = vunpack.c.h.b16 %v206
    %v256 = vunpack.c.l.b16 %v207
    %v257 = vunpack.c.h.b16 %v207
    %v258 = vunpack.c.l.b16 %v208
    %v259 = vunpack.c.h.b16 %v208
    %v260 = vunpack.c.l.b16 %v209
    %v261 = vunpack.c.h.b16 %v209
    %v262 = vunpack.c.l.b16 %v210
    %v263 = vunpack.c.h.b16 %v210
    %v264 = vunpack.c.l.b16 %v211
    %v265 = vunpack.c.h.b16 %v211
    %v266 = vunpack.c.l.b16 %v212
    %v267 = vunpack.c.h.b16 %v212
    %v268 = vunpack.c.l.b16 %v213
    %v269 = vunpack.c.h.b16 %v213
    %v270 = vunpack.c.l.b16 %v214
    %v271 = vunpack.c.h.b16 %v214
    %v272 = vunpack.c.l.b16 %v215
    %v273 = vunpack.c.h.b16 %v215
    %v274 = vunpack.c.l.b16 %v216
    %v275 = vunpack.c.h.b16 %v216
    %v276 = vunpack.c.l.b16 %v217
    %v277 = vunpack.c.h.b16 %v217
    %v278 = vpack.c.b16 %v248, %v246
    %v279 = vpack.c.b16 %v249, %v247
    %v280 = vpack.c.b16 %v252, %v250
    %v281 = vpack.c.b16 %v253, %v251
    %v282 = vpack.c.b16 %v256, %v254
    %v283 = vpack.c.b16 %v257, %v255
    %v284 = vpack.c.b16 %v260, %v258
    %v285 = vpack.c.b16 %v261, %v259
    %v286 = vpack.c.b16 %v264, %v262
    %v287 = vpack.c.b16 %v265, %v263
    %v288 = vpack.c.b16 %v268, %v266
    %v289 = vpack.c.b16 %v269, %v267
    %v290 = vpack.c.b16 %v272, %v270
    %v291 = vpack.c.b16 %v273, %v271
    %v292 = vpack.c.b16 %v276, %v274
    %v293 = vpack.c.b16 %v277, %v275
    %310 = vmatprep.subr.bf16.mxu0 %v279
    %311 = vmatpush1.bf16.msra.mxu0 %v278
    %312 = vmatprep.subr.bf16.mxu0 %v281
    %313 = vmatpush1.bf16.msra.mxu0 %v280
    %314 = vmatprep.subr.bf16.mxu0 %v283
    %315 = vmatpush1.bf16.msra.mxu0 %v282
    %316 = vmatprep.subr.bf16.mxu0 %v285
    %317 = vmatpush1.bf16.msra.mxu0 %v284
    %318 = vmatprep.subr.bf16.mxu0 %v287
    %319 = vmatpush1.bf16.msra.mxu0 %v286
    %320 = vmatprep.subr.bf16.mxu0 %v289
    %321 = vmatpush1.bf16.msra.mxu0 %v288
    %322 = vmatprep.subr.bf16.mxu0 %v291
    %323 = vmatpush1.bf16.msra.mxu0 %v290
    %324 = vmatprep.subr.bf16.mxu0 %v293
    %325 = vmatpush1.bf16.msra.mxu0 %v292
    %326 = vmatprep.subr.bf16.mxu0 0
    %327 = vmatpush1.bf16.msra.mxu0 0
    %328 = vmatprep.subr.bf16.mxu0 0
    %329 = vmatpush1.bf16.msra.mxu0 0
    %330 = vmatprep.subr.bf16.mxu0 0
    %331 = vmatpush1.bf16.msra.mxu0 0
    %332 = vmatprep.subr.bf16.mxu0 0
    %333 = vmatpush1.bf16.msra.mxu0 0
    %334 = vmatprep.subr.bf16.mxu0 0
    %335 = vmatpush1.bf16.msra.mxu0 0
    %336 = vmatprep.subr.bf16.mxu0 0
    %337 = vmatpush1.bf16.msra.mxu0 0
    %338 = vmatprep.subr.bf16.mxu0 0
    %339 = vmatpush1.bf16.msra.mxu0 0
    %340 = vmatprep.subr.bf16.mxu0 0
    %341 = vmatpush1.bf16.msra.mxu0 0
    %342 = vmatprep.mubr.bf16.mxu0 0
    %343 = vmatmul.mubr.bf16.gmra.mrb[0].mxu0 %v201
    %v344 = vpop.f32.mrb[0].mxu0
    %v345 = vadd.f32 %v223, %v344
    %v346 = vpop.f32.mrb[0].mxu0
    %v347 = vadd.f32 %v227, %v346
    %v348 = vpop.f32.mrb[0].mxu0
    %v349 = vpop.f32.mrb[0].mxu0
    %350 = vdwg.mxu0
    %v351 = vmax.f32 %v345, 0.0
    %v352 = vmax.f32 %v347, 0.0
    %v353 = vpack.c.bf16 %v351, %v351
    %v354 = vpack.c.bf16 %v352, %v352
    %v355 = vld [vmem:[#allocation6] sm:$0xff]
    %v356 = vld [vmem:[#allocation6 + $0x8] sm:$0xff]
    %v357 = vld [vmem:[#allocation6 + $0x10] sm:$0xff]
    %v358 = vld [vmem:[#allocation6 + $0x18] sm:$0xff]
    %v359 = vld [vmem:[#allocation6 + $0x20] sm:$0xff]
    %v360 = vld [vmem:[#allocation6 + $0x28] sm:$0xff]
    %v361 = vld [vmem:[#allocation6 + $0x30] sm:$0xff]
    %v362 = vld [vmem:[#allocation6 + $0x38] sm:$0xff]
    %v363 = vld [vmem:[#allocation6 + $0x40] sm:$0xff]
    %v364 = vld [vmem:[#allocation6 + $0x48] sm:$0xff]
    %v365 = vld [vmem:[#allocation6 + $0x50] sm:$0xff]
    %v366 = vld [vmem:[#allocation6 + $0x58] sm:$0xff]
    %v367 = vld [vmem:[#allocation6 + $0x60] sm:$0xff]
    %v368 = vld [vmem:[#allocation6 + $0x68] sm:$0xff]
    %v369 = vld [vmem:[#allocation6 + $0x70] sm:$0xff]
    %v370 = vld [vmem:[#allocation6 + $0x78] sm:$0xff]
    %v371 = vld [vmem:[#allocation6 + $0x80] sm:$0xff]
    %v372 = vld [vmem:[#allocation6 + $0x88] sm:$0xff]
    %v373 = vld [vmem:[#allocation6 + $0x90] sm:$0xff]
    %v374 = vld [vmem:[#allocation6 + $0x98] sm:$0xff]
    %v375 = vld [vmem:[#allocation6 + $0xa0] sm:$0xff]
    %v376 = vld [vmem:[#allocation6 + $0xa8] sm:$0xff]
    %v377 = vld [vmem:[#allocation6 + $0xb0] sm:$0xff]
    %v378 = vld [vmem:[#allocation6 + $0xb8] sm:$0xff]
    %v379 = vld [vmem:[#allocation6 + $0xc0] sm:$0xff]
    %v380 = vld [vmem:[#allocation6 + $0xc8] sm:$0xff]
    %v381 = vld [vmem:[#allocation6 + $0xd0] sm:$0xff]
    %v382 = vld [vmem:[#allocation6 + $0xd8] sm:$0xff]
    %v383 = vld [vmem:[#allocation6 + $0xe0] sm:$0xff]
    %v384 = vld [vmem:[#allocation6 + $0xe8] sm:$0xff]
    %v385 = vld [vmem:[#allocation6 + $0xf0] sm:$0xff]
    %v386 = vld [vmem:[#allocation6 + $0xf8] sm:$0xff]
    %v387 = vld [vmem:[#allocation6 + $0x100] sm:$0xff]
    %v388 = vld [vmem:[#allocation6 + $0x108] sm:$0xff]
    %v389 = vld [vmem:[#allocation6 + $0x110] sm:$0xff]
    %v390 = vld [vmem:[#allocation6 + $0x118] sm:$0xff]
    %v391 = vld [vmem:[#allocation6 + $0x120] sm:$0xff]
    %v392 = vld [vmem:[#allocation6 + $0x128] sm:$0xff]
    %v393 = vld [vmem:[#allocation6 + $0x130] sm:$0xff]
    %v394 = vld [vmem:[#allocation6 + $0x138] sm:$0xff]
    %v395 = vld [vmem:[#allocation6 + $0x140] sm:$0xff]
    %v396 = vld [vmem:[#allocation6 + $0x148] sm:$0xff]
    %v397 = vld [vmem:[#allocation6 + $0x150] sm:$0xff]
    %v398 = vld [vmem:[#allocation6 + $0x158] sm:$0xff]
    %v399 = vld [vmem:[#allocation6 + $0x160] sm:$0xff]
    %v400 = vld [vmem:[#allocation6 + $0x168] sm:$0xff]
    %v401 = vld [vmem:[#allocation6 + $0x170] sm:$0xff]
    %v402 = vld [vmem:[#allocation6 + $0x178] sm:$0xff]
    %v403 = vld [vmem:[#allocation6 + $0x180] sm:$0xff]
    %v404 = vld [vmem:[#allocation6 + $0x188] sm:$0xff]
    %v405 = vld [vmem:[#allocation6 + $0x190] sm:$0xff]
    %v406 = vld [vmem:[#allocation6 + $0x198] sm:$0xff]
    %v407 = vld [vmem:[#allocation6 + $0x1a0] sm:$0xff]
    %v408 = vld [vmem:[#allocation6 + $0x1a8] sm:$0xff]
    %v409 = vld [vmem:[#allocation6 + $0x1b0] sm:$0xff]
    %v410 = vld [vmem:[#allocation6 + $0x1b8] sm:$0xff]
    %v411 = vld [vmem:[#allocation6 + $0x1c0] sm:$0xff]
    %v412 = vld [vmem:[#allocation6 + $0x1c8] sm:$0xff]
    %v413 = vld [vmem:[#allocation6 + $0x1d0] sm:$0xff]
    %v414 = vld [vmem:[#allocation6 + $0x1d8] sm:$0xff]
    %v415 = vld [vmem:[#allocation6 + $0x1e0] sm:$0xff]
    %v416 = vld [vmem:[#allocation6 + $0x1e8] sm:$0xff]
    %v417 = vld [vmem:[#allocation6 + $0x1f0] sm:$0xff]
    %v418 = vld [vmem:[#allocation6 + $0x1f8] sm:$0xff]
    %v419 = vld [vmem:[%s6] sm:$0xf]
    %v421 = vlaneseq
    %v422 = vshrl.u32 %v421, 7
    %v423 = vsub.s32 0, %v422
    %v424 = vrot.slane %v419, %v423
    %v425 = vlaneseq
    %v426 = vshrl.u32 %v425, 7
    %v427 = vsub.s32 1, %v426
    %v428 = vrot.slane %v419, %v427
    %v429 = vlaneseq
    %v430 = vshrl.u32 %v429, 7
    %v431 = vsub.s32 2, %v430
    %v432 = vrot.slane %v419, %v431
    %v433 = vlaneseq
    %v434 = vshrl.u32 %v433, 7
    %v435 = vsub.s32 3, %v434
    %v436 = vrot.slane %v419, %v435
    %v505 = vunpack.c.l.b16 %v355
    %v506 = vunpack.c.h.b16 %v355
    %v507 = vunpack.c.l.b16 %v356
    %v508 = vunpack.c.h.b16 %v356
    %v509 = vunpack.c.l.b16 %v357
    %v510 = vunpack.c.h.b16 %v357
    %v511 = vunpack.c.l.b16 %v358
    %v512 = vunpack.c.h.b16 %v358
    %v513 = vunpack.c.l.b16 %v359
    %v514 = vunpack.c.h.b16 %v359
    %v515 = vunpack.c.l.b16 %v360
    %v516 = vunpack.c.h.b16 %v360
    %v517 = vunpack.c.l.b16 %v361
    %v518 = vunpack.c.h.b16 %v361
    %v519 = vunpack.c.l.b16 %v362
    %v520 = vunpack.c.h.b16 %v362
    %v521 = vunpack.c.l.b16 %v363
    %v522 = vunpack.c.h.b16 %v363
    %v523 = vunpack.c.l.b16 %v364
    %v524 = vunpack.c.h.b16 %v364
    %v525 = vunpack.c.l.b16 %v365
    %v526 = vunpack.c.h.b16 %v365
    %v527 = vunpack.c.l.b16 %v366
    %v528 = vunpack.c.h.b16 %v366
    %v529 = vunpack.c.l.b16 %v367
    %v530 = vunpack.c.h.b16 %v367
    %v531 = vunpack.c.l.b16 %v368
    %v532 = vunpack.c.h.b16 %v368
    %v533 = vunpack.c.l.b16 %v369
    %v534 = vunpack.c.h.b16 %v369
    %v535 = vunpack.c.l.b16 %v370
    %v536 = vunpack.c.h.b16 %v370
    %v537 = vunpack.c.l.b16 %v371
    %v538 = vunpack.c.h.b16 %v371
    %v539 = vunpack.c.l.b16 %v372
    %v540 = vunpack.c.h.b16 %v372
    %v541 = vunpack.c.l.b16 %v373
    %v542 = vunpack.c.h.b16 %v373
    %v543 = vunpack.c.l.b16 %v374
    %v544 = vunpack.c.h.b16 %v374
    %v545 = vunpack.c.l.b16 %v375
    %v546 = vunpack.c.h.b16 %v375
    %v547 = vunpack.c.l.b16 %v376
    %v548 = vunpack.c.h.b16 %v376
    %v549 = vunpack.c.l.b16 %v377
    %v550 = vunpack.c.h.b16 %v377
    %v551 = vunpack.c.l.b16 %v378
    %v552 = vunpack.c.h.b16 %v378
    %v553 = vunpack.c.l.b16 %v379
    %v554 = vunpack.c.h.b16 %v379
    %v555 = vunpack.c.l.b16 %v380
    %v556 = vunpack.c.h.b16 %v380
    %v557 = vunpack.c.l.b16 %v381
    %v558 = vunpack.c.h.b16 %v381
    %v559 = vunpack.c.l.b16 %v382
    %v560 = vunpack.c.h.b16 %v382
    %v561 = vunpack.c.l.b16 %v383
    %v562 = vunpack.c.h.b16 %v383
    %v563 = vunpack.c.l.b16 %v384
    %v564 = vunpack.c.h.b16 %v384
    %v565 = vunpack.c.l.b16 %v385
    %v566 = vunpack.c.h.b16 %v385
    %v567 = vunpack.c.l.b16 %v386
    %v568 = vunpack.c.h.b16 %v386
    %v569 = vunpack.c.l.b16 %v387
    %v570 = vunpack.c.h.b16 %v387
    %v571 = vunpack.c.l.b16 %v388
    %v572 = vunpack.c.h.b16 %v388
    %v573 = vunpack.c.l.b16 %v389
    %v574 = vunpack.c.h.b16 %v389
    %v575 = vunpack.c.l.b16 %v390
    %v576 = vunpack.c.h.b16 %v390
    %v577 = vunpack.c.l.b16 %v391
    %v578 = vunpack.c.h.b16 %v391
    %v579 = vunpack.c.l.b16 %v392
    %v580 = vunpack.c.h.b16 %v392
    %v581 = vunpack.c.l.b16 %v393
    %v582 = vunpack.c.h.b16 %v393
    %v583 = vunpack.c.l.b16 %v394
    %v584 = vunpack.c.h.b16 %v394
    %v585 = vunpack.c.l.b16 %v395
    %v586 = vunpack.c.h.b16 %v395
    %v587 = vunpack.c.l.b16 %v396
    %v588 = vunpack.c.h.b16 %v396
    %v589 = vunpack.c.l.b16 %v397
    %v590 = vunpack.c.h.b16 %v397
    %v591 = vunpack.c.l.b16 %v398
    %v592 = vunpack.c.h.b16 %v398
    %v593 = vunpack.c.l.b16 %v399
    %v594 = vunpack.c.h.b16 %v399
    %v595 = vunpack.c.l.b16 %v400
    %v596 = vunpack.c.h.b16 %v400
    %v597 = vunpack.c.l.b16 %v401
    %v598 = vunpack.c.h.b16 %v401
    %v599 = vunpack.c.l.b16 %v402
    %v600 = vunpack.c.h.b16 %v402
    %v601 = vunpack.c.l.b16 %v403
    %v602 = vunpack.c.h.b16 %v403
    %v603 = vunpack.c.l.b16 %v404
    %v604 = vunpack.c.h.b16 %v404
    %v605 = vunpack.c.l.b16 %v405
    %v606 = vunpack.c.h.b16 %v405
    %v607 = vunpack.c.l.b16 %v406
    %v608 = vunpack.c.h.b16 %v406
    %v609 = vunpack.c.l.b16 %v407
    %v610 = vunpack.c.h.b16 %v407
    %v611 = vunpack.c.l.b16 %v408
    %v612 = vunpack.c.h.b16 %v408
    %v613 = vunpack.c.l.b16 %v409
    %v614 = vunpack.c.h.b16 %v409
    %v615 = vunpack.c.l.b16 %v410
    %v616 = vunpack.c.h.b16 %v410
    %v617 = vunpack.c.l.b16 %v411
    %v618 = vunpack.c.h.b16 %v411
    %v619 = vunpack.c.l.b16 %v412
    %v620 = vunpack.c.h.b16 %v412
    %v621 = vunpack.c.l.b16 %v413
    %v622 = vunpack.c.h.b16 %v413
    %v623 = vunpack.c.l.b16 %v414
    %v624 = vunpack.c.h.b16 %v414
    %v625 = vunpack.c.l.b16 %v415
    %v626 = vunpack.c.h.b16 %v415
    %v627 = vunpack.c.l.b16 %v416
    %v628 = vunpack.c.h.b16 %v416
    %v629 = vunpack.c.l.b16 %v417
    %v630 = vunpack.c.h.b16 %v417
    %v631 = vunpack.c.l.b16 %v418
    %v632 = vunpack.c.h.b16 %v418
    %v633 = vpack.c.b16 %v509, %v505
    %v634 = vpack.c.b16 %v510, %v506
    %v635 = vpack.c.b16 %v511, %v507
    %v636 = vpack.c.b16 %v512, %v508
    %v637 = vpack.c.b16 %v517, %v513
    %v638 = vpack.c.b16 %v518, %v514
    %v639 = vpack.c.b16 %v519, %v515
    %v640 = vpack.c.b16 %v520, %v516
    %v641 = vpack.c.b16 %v525, %v521
    %v642 = vpack.c.b16 %v526, %v522
    %v643 = vpack.c.b16 %v527, %v523
    %v644 = vpack.c.b16 %v528, %v524
    %v645 = vpack.c.b16 %v533, %v529
    %v646 = vpack.c.b16 %v534, %v530
    %v647 = vpack.c.b16 %v535, %v531
    %v648 = vpack.c.b16 %v536, %v532
    %v649 = vpack.c.b16 %v541, %v537
    %v650 = vpack.c.b16 %v542, %v538
    %v651 = vpack.c.b16 %v543, %v539
    %v652 = vpack.c.b16 %v544, %v540
    %v653 = vpack.c.b16 %v549, %v545
    %v654 = vpack.c.b16 %v550, %v546
    %v655 = vpack.c.b16 %v551, %v547
    %v656 = vpack.c.b16 %v552, %v548
    %v657 = vpack.c.b16 %v557, %v553
    %v658 = vpack.c.b16 %v558, %v554
    %v659 = vpack.c.b16 %v559, %v555
    %v660 = vpack.c.b16 %v560, %v556
    %v661 = vpack.c.b16 %v565, %v561
    %v662 = vpack.c.b16 %v566, %v562
    %v663 = vpack.c.b16 %v567, %v563
    %v664 = vpack.c.b16 %v568, %v564
    %v665 = vpack.c.b16 %v573, %v569
    %v666 = vpack.c.b16 %v574, %v570
    %v667 = vpack.c.b16 %v575, %v571
    %v668 = vpack.c.b16 %v576, %v572
    %v669 = vpack.c.b16 %v581, %v577
    %v670 = vpack.c.b16 %v582, %v578
    %v671 = vpack.c.b16 %v583, %v579
    %v672 = vpack.c.b16 %v584, %v580
    %v673 = vpack.c.b16 %v589, %v585
    %v674 = vpack.c.b16 %v590, %v586
    %v675 = vpack.c.b16 %v591, %v587
    %v676 = vpack.c.b16 %v592, %v588
    %v677 = vpack.c.b16 %v597, %v593
    %v678 = vpack.c.b16 %v598, %v594
    %v679 = vpack.c.b16 %v599, %v595
    %v680 = vpack.c.b16 %v600, %v596
    %v681 = vpack.c.b16 %v605, %v601
    %v682 = vpack.c.b16 %v606, %v602
    %v683 = vpack.c.b16 %v607, %v603
    %v684 = vpack.c.b16 %v608, %v604
    %v685 = vpack.c.b16 %v613, %v609
    %v686 = vpack.c.b16 %v614, %v610
    %v687 = vpack.c.b16 %v615, %v611
    %v688 = vpack.c.b16 %v616, %v612
    %v689 = vpack.c.b16 %v621, %v617
    %v690 = vpack.c.b16 %v622, %v618
    %v691 = vpack.c.b16 %v623, %v619
    %v692 = vpack.c.b16 %v624, %v620
    %v693 = vpack.c.b16 %v629, %v625
    %v694 = vpack.c.b16 %v630, %v626
    %v695 = vpack.c.b16 %v631, %v627
    %v696 = vpack.c.b16 %v632, %v628
    %761 = vmatprep.subr.bf16.mxu0 %v634
    %762 = vmatpush1.bf16.msra.mxu0 %v633
    %763 = vmatprep.subr.bf16.mxu0 %v638
    %764 = vmatpush1.bf16.msra.mxu0 %v637
    %765 = vmatprep.subr.bf16.mxu0 %v642
    %766 = vmatpush1.bf16.msra.mxu0 %v641
    %767 = vmatprep.subr.bf16.mxu0 %v646
    %768 = vmatpush1.bf16.msra.mxu0 %v645
    %769 = vmatprep.subr.bf16.mxu0 %v650
    %770 = vmatpush1.bf16.msra.mxu0 %v649
    %771 = vmatprep.subr.bf16.mxu0 %v654
    %772 = vmatpush1.bf16.msra.mxu0 %v653
    %773 = vmatprep.subr.bf16.mxu0 %v658
    %774 = vmatpush1.bf16.msra.mxu0 %v657
    %775 = vmatprep.subr.bf16.mxu0 %v662
    %776 = vmatpush1.bf16.msra.mxu0 %v661
    %777 = vmatprep.subr.bf16.mxu0 %v666
    %778 = vmatpush1.bf16.msra.mxu0 %v665
    %779 = vmatprep.subr.bf16.mxu0 %v670
    %780 = vmatpush1.bf16.msra.mxu0 %v669
    %781 = vmatprep.subr.bf16.mxu0 %v674
    %782 = vmatpush1.bf16.msra.mxu0 %v673
    %783 = vmatprep.subr.bf16.mxu0 %v678
    %784 = vmatpush1.bf16.msra.mxu0 %v677
    %785 = vmatprep.subr.bf16.mxu0 %v682
    %786 = vmatpush1.bf16.msra.mxu0 %v681
    %787 = vmatprep.subr.bf16.mxu0 %v686
    %788 = vmatpush1.bf16.msra.mxu0 %v685
    %789 = vmatprep.subr.bf16.mxu0 %v690
    %790 = vmatpush1.bf16.msra.mxu0 %v689
    %791 = vmatprep.subr.bf16.mxu0 %v694
    %792 = vmatpush1.bf16.msra.mxu0 %v693
    %793 = vmatprep.mubr.bf16.mxu0 %v354
    %794 = vmatmul.mubr.bf16.gmra.mrb[0].mxu0 %v353
    %v795 = vpop.f32.mrb[0].mxu0
    %v796 = vadd.f32 %v424, %v795
    %v797 = vpop.f32.mrb[0].mxu0
    %v798 = vadd.f32 %v428, %v797
    %v799 = vpop.f32.mrb[0].mxu0
    %v800 = vpop.f32.mrb[0].mxu0
    %801 = vdwg.mxu0
    %802 = vmatprep.subr.bf16.mxu0 %v636
    %803 = vmatpush1.bf16.msra.mxu0 %v635
    %804 = vmatprep.subr.bf16.mxu0 %v640
    %805 = vmatpush1.bf16.msra.mxu0 %v639
    %806 = vmatprep.subr.bf16.mxu0 %v644
    %807 = vmatpush1.bf16.msra.mxu0 %v643
    %808 = vmatprep.subr.bf16.mxu0 %v648
    %809 = vmatpush1.bf16.msra.mxu0 %v647
    %810 = vmatprep.subr.bf16.mxu0 %v652
    %811 = vmatpush1.bf16.msra.mxu0 %v651
    %812 = vmatprep.subr.bf16.mxu0 %v656
    %813 = vmatpush1.bf16.msra.mxu0 %v655
    %814 = vmatprep.subr.bf16.mxu0 %v660
    %815 = vmatpush1.bf16.msra.mxu0 %v659
    %816 = vmatprep.subr.bf16.mxu0 %v664
    %817 = vmatpush1.bf16.msra.mxu0 %v663
    %818 = vmatprep.subr.bf16.mxu0 %v668
    %819 = vmatpush1.bf16.msra.mxu0 %v667
    %820 = vmatprep.subr.bf16.mxu0 %v672
    %821 = vmatpush1.bf16.msra.mxu0 %v671
    %822 = vmatprep.subr.bf16.mxu0 %v676
    %823 = vmatpush1.bf16.msra.mxu0 %v675
    %824 = vmatprep.subr.bf16.mxu0 %v680
    %825 = vmatpush1.bf16.msra.mxu0 %v679
    %826 = vmatprep.subr.bf16.mxu0 %v684
    %827 = vmatpush1.bf16.msra.mxu0 %v683
    %828 = vmatprep.subr.bf16.mxu0 %v688
    %829 = vmatpush1.bf16.msra.mxu0 %v687
    %830 = vmatprep.subr.bf16.mxu0 %v692
    %831 = vmatpush1.bf16.msra.mxu0 %v691
    %832 = vmatprep.subr.bf16.mxu0 %v696
    %833 = vmatpush1.bf16.msra.mxu0 %v695
    %834 = vmatprep.mubr.bf16.mxu0 %v354
    %835 = vmatmul.mubr.bf16.gmra.mrb[0].mxu0 %v353
    %v836 = vpop.f32.mrb[0].mxu0
    %v837 = vadd.f32 %v432, %v836
    %v838 = vpop.f32.mrb[0].mxu0
    %v839 = vadd.f32 %v436, %v838
    %v840 = vpop.f32.mrb[0].mxu0
    %v841 = vpop.f32.mrb[0].mxu0
    %842 = vdwg.mxu0
    %v843 = vmax.f32 %v796, 0.0
    %v844 = vmax.f32 %v798, 0.0
    %v845 = vmax.f32 %v837, 0.0
    %v846 = vmax.f32 %v839, 0.0
    %v847 = vpack.c.bf16 %v843, %v843
    %v848 = vpack.c.bf16 %v844, %v844
    %v849 = vpack.c.bf16 %v845, %v845
    %v850 = vpack.c.bf16 %v846, %v846
    %v851 = vld [vmem:[#allocation7] sm:$0xf]
    %v852 = vld [vmem:[#allocation7 + $0x4] sm:$0xf]
    %v853 = vld [vmem:[#allocation7 + $0x8] sm:$0xf]
    %v854 = vld [vmem:[#allocation7 + $0xc] sm:$0xf]
    %v855 = vld [vmem:[#allocation7 + $0x10] sm:$0xf]
    %v856 = vld [vmem:[#allocation7 + $0x14] sm:$0xf]
    %v857 = vld [vmem:[#allocation7 + $0x18] sm:$0xf]
    %v858 = vld [vmem:[#allocation7 + $0x1c] sm:$0xf]
    %v859 = vld [vmem:[#allocation7 + $0x20] sm:$0xf]
    %v860 = vld [vmem:[#allocation7 + $0x24] sm:$0xf]
    %v861 = vld [vmem:[#allocation7 + $0x28] sm:$0xf]
    %v862 = vld [vmem:[#allocation7 + $0x2c] sm:$0xf]
    %v863 = vld [vmem:[#allocation7 + $0x30] sm:$0xf]
    %v864 = vld [vmem:[#allocation7 + $0x34] sm:$0xf]
    %v865 = vld [vmem:[#allocation7 + $0x38] sm:$0xf]
    %v866 = vld [vmem:[#allocation7 + $0x3c] sm:$0xf]
    %v867 = vld [vmem:[#allocation7 + $0x40] sm:$0xf]
    %v868 = vld [vmem:[#allocation7 + $0x44] sm:$0xf]
    %v869 = vld [vmem:[#allocation7 + $0x48] sm:$0xf]
    %v870 = vld [vmem:[#allocation7 + $0x4c] sm:$0xf]
    %v871 = vld [vmem:[#allocation7 + $0x50] sm:$0xf]
    %v872 = vld [vmem:[#allocation7 + $0x54] sm:$0xf]
    %v873 = vld [vmem:[#allocation7 + $0x58] sm:$0xf]
    %v874 = vld [vmem:[#allocation7 + $0x5c] sm:$0xf]
    %v875 = vld [vmem:[#allocation7 + $0x60] sm:$0xf]
    %v876 = vld [vmem:[#allocation7 + $0x64] sm:$0xf]
    %v877 = vld [vmem:[#allocation7 + $0x68] sm:$0xf]
    %v878 = vld [vmem:[#allocation7 + $0x6c] sm:$0xf]
    %v879 = vld [vmem:[#allocation7 + $0x70] sm:$0xf]
    %v880 = vld [vmem:[#allocation7 + $0x74] sm:$0xf]
    %v881 = vld [vmem:[#allocation7 + $0x78] sm:$0xf]
    %v882 = vld [vmem:[#allocation7 + $0x7c] sm:$0xf]
    %v883 = vld [vmem:[#allocation7 + $0x80] sm:$0xf]
    %v884 = vld [vmem:[#allocation7 + $0x84] sm:$0xf]
    %v885 = vld [vmem:[#allocation7 + $0x88] sm:$0xf]
    %v886 = vld [vmem:[#allocation7 + $0x8c] sm:$0xf]
    %v887 = vld [vmem:[#allocation7 + $0x90] sm:$0xf]
    %v888 = vld [vmem:[#allocation7 + $0x94] sm:$0xf]
    %v889 = vld [vmem:[#allocation7 + $0x98] sm:$0xf]
    %v890 = vld [vmem:[#allocation7 + $0x9c] sm:$0xf]
    %v891 = vld [vmem:[#allocation7 + $0xa0] sm:$0xf]
    %v892 = vld [vmem:[#allocation7 + $0xa4] sm:$0xf]
    %v893 = vld [vmem:[#allocation7 + $0xa8] sm:$0xf]
    %v894 = vld [vmem:[#allocation7 + $0xac] sm:$0xf]
    %v895 = vld [vmem:[#allocation7 + $0xb0] sm:$0xf]
    %v896 = vld [vmem:[#allocation7 + $0xb4] sm:$0xf]
    %v897 = vld [vmem:[#allocation7 + $0xb8] sm:$0xf]
    %v898 = vld [vmem:[#allocation7 + $0xbc] sm:$0xf]
    %v899 = vld [vmem:[#allocation7 + $0xc0] sm:$0xf]
    %v900 = vld [vmem:[#allocation7 + $0xc4] sm:$0xf]
    %v901 = vld [vmem:[#allocation7 + $0xc8] sm:$0xf]
    %v902 = vld [vmem:[#allocation7 + $0xcc] sm:$0xf]
    %v903 = vld [vmem:[#allocation7 + $0xd0] sm:$0xf]
    %v904 = vld [vmem:[#allocation7 + $0xd4] sm:$0xf]
    %v905 = vld [vmem:[#allocation7 + $0xd8] sm:$0xf]
    %v906 = vld [vmem:[#allocation7 + $0xdc] sm:$0xf]
    %v907 = vld [vmem:[#allocation7 + $0xe0] sm:$0xf]
    %v908 = vld [vmem:[#allocation7 + $0xe4] sm:$0xf]
    %v909 = vld [vmem:[#allocation7 + $0xe8] sm:$0xf]
    %v910 = vld [vmem:[#allocation7 + $0xec] sm:$0xf]
    %v911 = vld [vmem:[#allocation7 + $0xf0] sm:$0xf]
    %v912 = vld [vmem:[#allocation7 + $0xf4] sm:$0xf]
    %v913 = vld [vmem:[#allocation7 + $0xf8] sm:$0xf]
    %v914 = vld [vmem:[#allocation7 + $0xfc] sm:$0xf]
    %v915 = vld [vmem:[%s8] sm:$0x1]
    %v917 = vlaneseq
    %v918 = vshrl.u32 %v917, 7
    %v919 = vsub.s32 0, %v918
    %v920 = vrot.slane %v915, %v919
    %v986 = vunpack.c.l.b16 %v851
    %v987 = vunpack.c.l.b16 %v852
    %v988 = vunpack.c.l.b16 %v853
    %v989 = vunpack.c.l.b16 %v854
    %v990 = vunpack.c.l.b16 %v855
    %v991 = vunpack.c.l.b16 %v856
    %v992 = vunpack.c.l.b16 %v857
    %v993 = vunpack.c.l.b16 %v858
    %v994 = vunpack.c.l.b16 %v859
    %v995 = vunpack.c.l.b16 %v860
    %v996 = vunpack.c.l.b16 %v861
    %v997 = vunpack.c.l.b16 %v862
    %v998 = vunpack.c.l.b16 %v863
    %v999 = vunpack.c.l.b16 %v864
    %v1000 = vunpack.c.l.b16 %v865
    %v1001 = vunpack.c.l.b16 %v866
    %v1002 = vunpack.c.l.b16 %v867
    %v1003 = vunpack.c.l.b16 %v868
    %v1004 = vunpack.c.l.b16 %v869
    %v1005 = vunpack.c.l.b16 %v870
    %v1006 = vunpack.c.l.b16 %v871
    %v1007 = vunpack.c.l.b16 %v872
    %v1008 = vunpack.c.l.b16 %v873
    %v1009 = vunpack.c.l.b16 %v874
    %v1010 = vunpack.c.l.b16 %v875
    %v1011 = vunpack.c.l.b16 %v876
    %v1012 = vunpack.c.l.b16 %v877
    %v1013 = vunpack.c.l.b16 %v878
    %v1014 = vunpack.c.l.b16 %v879
    %v1015 = vunpack.c.l.b16 %v880
    %v1016 = vunpack.c.l.b16 %v881
    %v1017 = vunpack.c.l.b16 %v882
    %v1018 = vunpack.c.l.b16 %v883
    %v1019 = vunpack.c.l.b16 %v884
    %v1020 = vunpack.c.l.b16 %v885
    %v1021 = vunpack.c.l.b16 %v886
    %v1022 = vunpack.c.l.b16 %v887
    %v1023 = vunpack.c.l.b16 %v888
    %v1024 = vunpack.c.l.b16 %v889
    %v1025 = vunpack.c.l.b16 %v890
    %v1026 = vunpack.c.l.b16 %v891
    %v1027 = vunpack.c.l.b16 %v892
    %v1028 = vunpack.c.l.b16 %v893
    %v1029 = vunpack.c.l.b16 %v894
    %v1030 = vunpack.c.l.b16 %v895
    %v1031 = vunpack.c.l.b16 %v896
    %v1032 = vunpack.c.l.b16 %v897
    %v1033 = vunpack.c.l.b16 %v898
    %v1034 = vunpack.c.l.b16 %v899
    %v1035 = vunpack.c.l.b16 %v900
    %v1036 = vunpack.c.l.b16 %v901
    %v1037 = vunpack.c.l.b16 %v902
    %v1038 = vunpack.c.l.b16 %v903
    %v1039 = vunpack.c.l.b16 %v904
    %v1040 = vunpack.c.l.b16 %v905
    %v1041 = vunpack.c.l.b16 %v906
    %v1042 = vunpack.c.l.b16 %v907
    %v1043 = vunpack.c.l.b16 %v908
    %v1044 = vunpack.c.l.b16 %v909
    %v1045 = vunpack.c.l.b16 %v910
    %v1046 = vunpack.c.l.b16 %v911
    %v1047 = vunpack.c.l.b16 %v912
    %v1048 = vunpack.c.l.b16 %v913
    %v1049 = vunpack.c.l.b16 %v914
    %v1050 = vpack.c.b16 %v987, %v986
    %v1051 = vpack.c.b16 %v989, %v988
    %v1052 = vpack.c.b16 %v991, %v990
    %v1053 = vpack.c.b16 %v993, %v992
    %v1054 = vpack.c.b16 %v995, %v994
    %v1055 = vpack.c.b16 %v997, %v996
    %v1056 = vpack.c.b16 %v999, %v998
    %v1057 = vpack.c.b16 %v1001, %v1000
    %v1058 = vpack.c.b16 %v1003, %v1002
    %v1059 = vpack.c.b16 %v1005, %v1004
    %v1060 = vpack.c.b16 %v1007, %v1006
    %v1061 = vpack.c.b16 %v1009, %v1008
    %v1062 = vpack.c.b16 %v1011, %v1010
    %v1063 = vpack.c.b16 %v1013, %v1012
    %v1064 = vpack.c.b16 %v1015, %v1014
    %v1065 = vpack.c.b16 %v1017, %v1016
    %v1066 = vpack.c.b16 %v1019, %v1018
    %v1067 = vpack.c.b16 %v1021, %v1020
    %v1068 = vpack.c.b16 %v1023, %v1022
    %v1069 = vpack.c.b16 %v1025, %v1024
    %v1070 = vpack.c.b16 %v1027, %v1026
    %v1071 = vpack.c.b16 %v1029, %v1028
    %v1072 = vpack.c.b16 %v1031, %v1030
    %v1073 = vpack.c.b16 %v1033, %v1032
    %v1074 = vpack.c.b16 %v1035, %v1034
    %v1075 = vpack.c.b16 %v1037, %v1036
    %v1076 = vpack.c.b16 %v1039, %v1038
    %v1077 = vpack.c.b16 %v1041, %v1040
    %v1078 = vpack.c.b16 %v1043, %v1042
    %v1079 = vpack.c.b16 %v1045, %v1044
    %v1080 = vpack.c.b16 %v1047, %v1046
    %v1081 = vpack.c.b16 %v1049, %v1048
    %1114 = vmatprep.subr.bf16.mxu0 0
    %1115 = vmatpush1.bf16.msra.mxu0 %v1050
    %1116 = vmatprep.subr.bf16.mxu0 0
    %1117 = vmatpush1.bf16.msra.mxu0 %v1051
    %1118 = vmatprep.subr.bf16.mxu0 0
    %1119 = vmatpush1.bf16.msra.mxu0 %v1052
    %1120 = vmatprep.subr.bf16.mxu0 0
    %1121 = vmatpush1.bf16.msra.mxu0 %v1053
    %1122 = vmatprep.subr.bf16.mxu0 0
    %1123 = vmatpush1.bf16.msra.mxu0 %v1054
    %1124 = vmatprep.subr.bf16.mxu0 0
    %1125 = vmatpush1.bf16.msra.mxu0 %v1055
    %1126 = vmatprep.subr.bf16.mxu0 0
    %1127 = vmatpush1.bf16.msra.mxu0 %v1056
    %1128 = vmatprep.subr.bf16.mxu0 0
    %1129 = vmatpush1.bf16.msra.mxu0 %v1057
    %1130 = vmatprep.subr.bf16.mxu0 0
    %1131 = vmatpush1.bf16.msra.mxu0 %v1058
    %1132 = vmatprep.subr.bf16.mxu0 0
    %1133 = vmatpush1.bf16.msra.mxu0 %v1059
    %1134 = vmatprep.subr.bf16.mxu0 0
    %1135 = vmatpush1.bf16.msra.mxu0 %v1060
    %1136 = vmatprep.subr.bf16.mxu0 0
    %1137 = vmatpush1.bf16.msra.mxu0 %v1061
    %1138 = vmatprep.subr.bf16.mxu0 0
    %1139 = vmatpush1.bf16.msra.mxu0 %v1062
    %1140 = vmatprep.subr.bf16.mxu0 0
    %1141 = vmatpush1.bf16.msra.mxu0 %v1063
    %1142 = vmatprep.subr.bf16.mxu0 0
    %1143 = vmatpush1.bf16.msra.mxu0 %v1064
    %1144 = vmatprep.subr.bf16.mxu0 0
    %1145 = vmatpush1.bf16.msra.mxu0 %v1065
    %1146 = vmatprep.mubr.bf16.mxu0 %v848
    %1147 = vmatmul.mubr.bf16.gmra.mrb[0].mxu0 %v847
    %v1148 = vpop.f32.mrb[0].mxu0
    %v1149 = vadd.f32 %v920, %v1148
    %v1150 = vpop.f32.mrb[0].mxu0
    %v1151 = vpop.f32.mrb[0].mxu0
    %v1152 = vpop.f32.mrb[0].mxu0
    %1153 = vdwg.mxu0
    %1154 = vmatprep.subr.bf16.mxu0 0
    %1155 = vmatpush1.bf16.msra.mxu0 %v1066
    %1156 = vmatprep.subr.bf16.mxu0 0
    %1157 = vmatpush1.bf16.msra.mxu0 %v1067
    %1158 = vmatprep.subr.bf16.mxu0 0
    %1159 = vmatpush1.bf16.msra.mxu0 %v1068
    %1160 = vmatprep.subr.bf16.mxu0 0
    %1161 = vmatpush1.bf16.msra.mxu0 %v1069
    %1162 = vmatprep.subr.bf16.mxu0 0
    %1163 = vmatpush1.bf16.msra.mxu0 %v1070
    %1164 = vmatprep.subr.bf16.mxu0 0
    %1165 = vmatpush1.bf16.msra.mxu0 %v1071
    %1166 = vmatprep.subr.bf16.mxu0 0
    %1167 = vmatpush1.bf16.msra.mxu0 %v1072
    %1168 = vmatprep.subr.bf16.mxu0 0
    %1169 = vmatpush1.bf16.msra.mxu0 %v1073
    %1170 = vmatprep.subr.bf16.mxu0 0
    %1171 = vmatpush1.bf16.msra.mxu0 %v1074
    %1172 = vmatprep.subr.bf16.mxu0 0
    %1173 = vmatpush1.bf16.msra.mxu0 %v1075
    %1174 = vmatprep.subr.bf16.mxu0 0
    %1175 = vmatpush1.bf16.msra.mxu0 %v1076
    %1176 = vmatprep.subr.bf16.mxu0 0
    %1177 = vmatpush1.bf16.msra.mxu0 %v1077
    %1178 = vmatprep.subr.bf16.mxu0 0
    %1179 = vmatpush1.bf16.msra.mxu0 %v1078
    %1180 = vmatprep.subr.bf16.mxu0 0
    %1181 = vmatpush1.bf16.msra.mxu0 %v1079
    %1182 = vmatprep.subr.bf16.mxu0 0
    %1183 = vmatpush1.bf16.msra.mxu0 %v1080
    %1184 = vmatprep.subr.bf16.mxu0 0
    %1185 = vmatpush1.bf16.msra.mxu0 %v1081
    %1186 = vmatprep.mubr.bf16.mxu0 %v850
    %1187 = vmatmul.mubr.bf16.gmra.mrb[0].mxu0 %v849
    %v1188 = vpop.f32.mrb[0].mxu0
    %v1189 = vadd.f32 %v1149, %v1188
    %v1190 = vpop.f32.mrb[0].mxu0
    %v1191 = vpop.f32.mrb[0].mxu0
    %v1192 = vpop.f32.mrb[0].mxu0
    %1193 = vdwg.mxu0
    %v1194 = vlaneseq
    %v1195 = vand.u32 %v1194, 127
    %vm1196 = vcmp.lt.s32.totalorder %v1195, 4
    %v1197 = vsel %vm1196, %v1189, 0.0
    %1198 = vadd.xlane.f32.xlu0 %v1197
    %v1199 = vpop.xlane.xlu0 %1198
    %v1200 = vmul.f32 %v1199, 0.25
    %vm1201 = vcmp.eq.s32.totalorder %v1195, 4
    %v1202 = vsel %vm1201, %v1189, 0.0
    %1203 = vadd.xlane.f32.xlu0 %v1202
    %v1204 = vpop.xlane.xlu0 %1203
    %v1205 = vsub.f32 %v1189, %v1200
    %v1206 = vadd.f32 %v1204, %v1205
    %v1207 = vsel %vm1196, %v1206, 0.0
    %1208 = vst [vmem:[%s9] sm:$0xff] %v1207
    // Predicated region
    $region54: #{dueling_dqn_forward.1} parent=1 // pred_check
      _
    $region55: #{dueling_dqn_forward.1} parent=1 // pred_check_branch
      %1210 = sbr.rel (0) target = $region57
    $region56: #{dueling_dqn_forward.1} parent=1 // pred_region
      _
    $region57: #{dueling_dqn_forward.1} parent=1 // pred_fallthru
      _
    // Predicated region
    $region58: #{dueling_dqn_forward.1} parent=1 // pred_check
      _
    $region59: #{dueling_dqn_forward.1} parent=1 // pred_check_branch
      %1212 = sbr.rel (0) target = $region61
    $region60: #{dueling_dqn_forward.1} parent=1 // pred_region
      _
    $region61: #{dueling_dqn_forward.1} parent=1 // pred_fallthru
      _
    %1213 = vsyncpa [#allocation3], 1
    %1214 = vsyncpa [#allocation5], 1
    %1215 = vsyncpa [#allocation8], 1

</llo_original>
